<compile_context>
chip_gen: v5e
topology: v5e:2x2
jax: 0.10.0
libtpu: 0.0.40
codegen_flags: <defaults>
</compile_context>

<pallas_src>
import functools

import jax
import jax.numpy as jnp
from jax.experimental import pallas as pl
from jax.experimental.pallas import tpu as pltpu

BN_EPS = 1e-5
PRELU_INIT = 0.25           # torch.nn.PReLU default
LANES = 128
# keep z VMEM-resident (counted double-buffered, bf16) while below this budget
Z_RESIDENT_BYTES = 12 << 20


# ----------------------------------------------------------------------------
# helpers
# ----------------------------------------------------------------------------
def _round_up(x, m):
    return ((x + m - 1) // m) * m


def _pad2(a, rows, cols):
    return jnp.pad(a, ((0, rows - a.shape[0]), (0, cols - a.shape[1])))


def _pick_tiles(n):
    """Return (row tile TM, adj-column tile TK, padded node count N_pad).

    Always yields >= 2 row tiles so the "parallel" axis can shard across the
    two TensorCores on v7x; large graphs use 512x2048 adjacency tiles so each
    grid step amortizes the ~0.35 us fixed overhead against >= 2 MiB of DMA.
    """
    n128 = _round_up(max(n, 8), LANES)
    if n128 <= 256:
        return 128, 256, 256                        # grid (2, 1)
    if n128 <= 4096:
        tm = min(512, _round_up(pl.cdiv(n128, 2), LANES))
        n_pad = _round_up(n128, tm)
        return tm, n_pad, n_pad                     # single adj-column step
    tm, tk = 512, 2048
    return tm, tk, _round_up(n128, tk)


def _vmem_limit(tm, tk, n_pad, fin_p, hp, z_resident, fused):
    """Tight scoped-VMEM budget for the chosen tiles (safe on v5e/v6e/v7x)."""
    adj = 2 * tm * tk * 2                                # bf16 adj, 2 buffers
    zin = (2 * n_pad * fin_p * 2) if z_resident else (2 * tk * fin_p * 2)
    wts = 2 * (fin_p * hp + hp * hp + 2 * hp) * 4        # MLP weights / biases
    if fused:
        wts += 2 * (hp * hp + 3 * hp) * 4                # BN scale/shift + proj
    acc = tm * fin_p * 4                                 # f32 accumulator
    out = 2 * tm * hp * (2 * 4 if fused else 2)          # output tiles, 2 buffers
    est = adj + zin + wts + acc + out
    return int(min(max(est + (4 << 20), 16 << 20), 32 << 20))


# ----------------------------------------------------------------------------
# kernel
# ----------------------------------------------------------------------------
def _gin_kernel(*refs, tk, z_resident, fused):
    """One GIN layer: out = PReLU(MLP((A + I) @ z)), eps = 0.

    Grid = (row tiles, adj-column tiles).  The k axis reduces (A + I) @ z into
    an f32 VMEM accumulator; the tiny MLP (+ optional fused encoder-BN and
    projection head on the last layer) runs once per row tile at the last k.
    """
    if fused:
        (adj_ref, z_ref, w1_ref, b1_ref, w2_ref, b2_ref, a_ref,
         s_ref, t_ref, pw_ref, pb_ref, pa_ref,
         z_out_ref, p_out_ref, acc_ref) = refs
    else:
        (adj_ref, z_ref, w1_ref, b1_ref, w2_ref, b2_ref, a_ref,
         out_ref, acc_ref) = refs

    k = pl.program_id(1)

    @pl.when(k == 0)
    def _init():
        acc_ref[...] = jnp.zeros_like(acc_ref)

    if z_resident:
        start = pl.multiple_of(k * tk, LANES)
        z_blk = z_ref[pl.ds(start, tk), :]          # slice the resident copy
    else:
        z_blk = z_ref[...]                          # streamed (TK, F) tile

    # bf16 (A + I) tile @ bf16 feature tile, f32 accumulation on the MXU.
    acc_ref[...] += jnp.dot(adj_ref[...], z_blk,
                            preferred_element_type=jnp.float32)

    @pl.when(k == pl.num_programs(1) - 1)
    def _finalize():
        agg = acc_ref[...]
        h = jnp.dot(agg, w1_ref[...], preferred_element_type=jnp.float32) + b1_ref[...]
        h = jnp.maximum(h, 0.0)
        h = jnp.dot(h, w2_ref[...], preferred_element_type=jnp.float32) + b2_ref[...]
        a = a_ref[0, 0]                             # shared PReLU slope (SMEM)
        z_act = jnp.where(h > 0.0, h, a * h)
        # F.dropout: identity in inference mode.
        if not fused:
            out_ref[...] = z_act.astype(out_ref.dtype)
        else:
            # encoder BatchNorm (pre-folded scale/shift) + projection head
            # (its BatchNorm folded into the Linear on the host).
            z_bn = z_act * s_ref[...] + t_ref[...]
            z_out_ref[...] = z_bn.astype(z_out_ref.dtype)
            p = jnp.dot(z_bn, pw_ref[...],
                        preferred_element_type=jnp.float32) + pb_ref[...]
            pa = pa_ref[0, 0]
            p_out_ref[...] = jnp.where(p > 0.0, p, pa * p).astype(p_out_ref.dtype)
            # projection-head Dropout: identity in inference mode.


# ----------------------------------------------------------------------------
# pallas_call wrapper
# ----------------------------------------------------------------------------
def _gin_layer_call(adj_bf16, z_bf16, w1, b1, w2, b2, act_a, *, tm, tk,
                    epilogue=None):
    n_pad = adj_bf16.shape[0]
    fin_p = z_bf16.shape[1]
    hp = w1.shape[1]
    fused = epilogue is not None

    z_resident = (2 * n_pad * fin_p * 2) <= Z_RESIDENT_BYTES
    grid = (n_pad // tm, n_pad // tk)

    kernel = functools.partial(_gin_kernel, tk=tk, z_resident=z_resident,
                               fused=fused)

    if z_resident:
        z_spec = pl.BlockSpec((n_pad, fin_p), lambda i, k: (0, 0))   # resident
    else:
        z_spec = pl.BlockSpec((tk, fin_p), lambda i, k: (k, 0))      # streamed

    in_specs = [
        pl.BlockSpec((tm, tk), lambda i, k: (i, k)),        # adj (+I, bf16)
        z_spec,                                             # z (bf16)
        pl.BlockSpec((fin_p, hp), lambda i, k: (0, 0)),     # w1 (resident)
        pl.BlockSpec((1, hp), lambda i, k: (0, 0)),         # b1
        pl.BlockSpec((hp, hp), lambda i, k: (0, 0)),        # w2 (resident)
        pl.BlockSpec((1, hp), lambda i, k: (0, 0)),         # b2
        pl.BlockSpec(memory_space=pltpu.MemorySpace.SMEM),  # encoder PReLU slope
    ]
    args = [adj_bf16, z_bf16, w1, b1, w2, b2, act_a]

    if fused:
        s, t, pw, pb, proj_a = epilogue
        in_specs += [
            pl.BlockSpec((1, hp), lambda i, k: (0, 0)),     # BN scale
            pl.BlockSpec((1, hp), lambda i, k: (0, 0)),     # BN shift
            pl.BlockSpec((hp, hp), lambda i, k: (0, 0)),    # proj weight (BN folded)
            pl.BlockSpec((1, hp), lambda i, k: (0, 0)),     # proj bias (BN folded)
            pl.BlockSpec(memory_space=pltpu.MemorySpace.SMEM),  # proj PReLU slope
        ]
        args += [s, t, pw, pb, proj_a]
        out_shape = (jax.ShapeDtypeStruct((n_pad, hp), jnp.float32),
                     jax.ShapeDtypeStruct((n_pad, hp), jnp.float32))
        out_specs = (pl.BlockSpec((tm, hp), lambda i, k: (i, 0)),
                     pl.BlockSpec((tm, hp), lambda i, k: (i, 0)))
    else:
        # intermediate layers round-trip z via HBM in bf16 (half the traffic)
        out_shape = jax.ShapeDtypeStruct((n_pad, hp), jnp.bfloat16)
        out_specs = pl.BlockSpec((tm, hp), lambda i, k: (i, 0))

    return pl.pallas_call(
        kernel,
        out_shape=out_shape,
        grid=grid,
        in_specs=in_specs,
        out_specs=out_specs,
        scratch_shapes=[pltpu.VMEM((tm, fin_p), jnp.float32)],
        compiler_params=pltpu.CompilerParams(
            dimension_semantics=("parallel", "arbitrary"),
            vmem_limit_bytes=_vmem_limit(tm, tk, n_pad, fin_p, hp,
                                         z_resident, fused)),
    )(*args)


def gconv_forward(x, adj, params):
    """x: (N, input_dim) f32, adj: (N, N) f32 dense adjacency with A[dst, src].

    Returns (z, p): encoder output after BatchNorm and projection-head output.
    """
    N, fin = x.shape
    H = params["layers"][-1][2].shape[1]

    hp = _round_up(H, LANES)
    fp0 = _round_up(fin, LANES)
    tm, tk, n_pad = _pick_tiles(N)

    # GIN self-term (eps = 0) folded into the adjacency: A + I, then bf16.
    # Diagonal 1s (and 0/1 edge weights) are exact in bf16.
    adj_si = adj.astype(jnp.float32) + jnp.eye(N, dtype=jnp.float32)
    adj_p = _pad2(adj_si, n_pad, n_pad).astype(jnp.bfloat16)

    act_a = params["act_a"].reshape(1, 1).astype(jnp.float32)
    proj_a = params["proj_a"].reshape(1, 1).astype(jnp.float32)

    # --- fold inference BatchNorms on the host -------------------------------
    g, b, m, v = params["bn"]
    s = g * jax.lax.rsqrt(v + BN_EPS)             # encoder BN -> scale/shift
    t = b - m * s
    s_p, t_p = _pad2(s, 1, hp), _pad2(t, 1, hp)

    pw, pb = params["proj_lin"]
    pg, pbeta, pm, pv = params["proj_bn"]
    ps = pg * jax.lax.rsqrt(pv + BN_EPS)          # projection BN folded into Linear
    pw_p = _pad2(pw * ps, hp, hp)
    pb_p = _pad2((pb - pm) * ps + pbeta, 1, hp)

    # --- GIN layers (one tiled pallas_call each) -----------------------------
    z = _pad2(x.astype(jnp.float32), n_pad, fp0).astype(jnp.bfloat16)
    fin_p = fp0
    n_layers = len(params["layers"])
    out = None
    for li, (w1, b1, w2, b2) in enumerate(params["layers"]):
        last = (li == n_layers - 1)
        w1_p = _pad2(w1, fin_p, hp)
        b1_p = _pad2(b1, 1, hp)
        w2_p = _pad2(w2, hp, hp)
        b2_p = _pad2(b2, 1, hp)
        epi = (s_p, t_p, pw_p, pb_p, proj_a) if last else None
        out = _gin_layer_call(adj_p, z, w1_p, b1_p, w2_p, b2_p, act_a,
                              tm=tm, tk=tk, epilogue=epi)
        if not last:
            z = out                               # bf16 inter-layer features
        fin_p = hp

    z_out_p, p_out_p = out                        # fused last layer outputs
    return z_out_p[:N, :H], p_out_p[:N, :H]


# ----------------------------------------------------------------------------
# parameters, pure-JAX reference, graph helper
# ----------------------------------------------------------------------------
def _linear_init(k, fan_in, fan_out):
    kw, kb = jax.random.split(k)
    bound = fan_in ** -0.5
    w = jax.random.uniform(kw, (fan_in, fan_out), jnp.float32, -bound, bound)
    b = jax.random.uniform(kb, (1, fan_out), jnp.float32, -bound, bound)
    return w, b


def _bn_init(k, dim):
    kg, kb, km, kv = jax.random.split(k, 4)
    gamma = 1.0 + 0.1 * jax.random.normal(kg, (1, dim), jnp.float32)
    beta = 0.1 * jax.random.normal(kb, (1, dim), jnp.float32)
    mean = 0.1 * jax.random.normal(km, (1, dim), jnp.float32)
    var = 1.0 + 0.1 * jax.random.uniform(kv, (1, dim), jnp.float32)
    return gamma, beta, mean, var


def init_params(key, input_dim, hidden_dim, num_layers):
    keys = jax.random.split(key, 2 * num_layers + 3)
    ki = 0

    layers = []
    in_dim = input_dim
    for _ in range(num_layers):
        w1, b1 = _linear_init(keys[ki], in_dim, hidden_dim); ki += 1
        w2, b2 = _linear_init(keys[ki], hidden_dim, hidden_dim); ki += 1
        layers.append((w1, b1, w2, b2))
        in_dim = hidden_dim

    bn = _bn_init(keys[ki], hidden_dim); ki += 1
    pw, pb = _linear_init(keys[ki], hidden_dim, hidden_dim); ki += 1
    pbn = _bn_init(keys[ki], hidden_dim); ki += 1

    return {
        "layers": layers,
        "bn": list(bn),
        "proj_lin": [pw, pb],
        "proj_bn": list(pbn),
        "act_a": jnp.full((1, 1), PRELU_INIT, jnp.float32),
        "proj_a": jnp.full((1, 1), PRELU_INIT, jnp.float32),
    }


def gconv_reference(x, adj, params):
    """Pure-JAX f32 reference for the same inference-mode forward pass."""
    a_enc = params["act_a"][0, 0]
    a_proj = params["proj_a"][0, 0]
    z = x.astype(jnp.float32)
    for (w1, b1, w2, b2) in params["layers"]:
        agg = z + adj @ z
        h = jnp.maximum(agg @ w1 + b1, 0.0)
        h = h @ w2 + b2
        z = jnp.where(h > 0, h, a_enc * h)
    g, b, m, v = params["bn"]
    z = (z - m) / jnp.sqrt(v + BN_EPS) * g + b
    pw, pb = params["proj_lin"]
    pg, pbeta, pm, pv = params["proj_bn"]
    p = z @ pw + pb
    p = (p - pm) / jnp.sqrt(pv + BN_EPS) * pg + pbeta
    p = jnp.where(p > 0, p, a_proj * p)
    return z, p


def edge_index_to_dense_adj(edge_index, num_nodes, edge_weight=None):
    src = edge_index[0]
    dst = edge_index[1]
    if edge_weight is None:
        edge_weight = jnp.ones((edge_index.shape[1],), jnp.float32)
    adj = jnp.zeros((num_nodes, num_nodes), jnp.float32)
    # message flows source -> target: out[i] = sum_{(s->i)} w * x[s]
    return adj.at[dst, src].add(edge_weight)


# ----------------------------------------------------------------------------
# demo
# ----------------------------------------------------------------------------
if __name__ == "__main__":
    key = jax.random.PRNGKey(0)
    k_x, k_p = jax.random.split(key)

    N = 32            # number of nodes
    input_dim = 16
    hidden_dim = 32
    num_layers = 2

    # node features
    x = jax.random.normal(k_x, (N, input_dim), jnp.float32)

    # deterministic edge_index: bidirectional ring graph (2, 2N)
    nodes = jnp.arange(N, dtype=jnp.int32)
    nxt = (nodes + 1) % N
    edge_index = jnp.concatenate(
        [jnp.stack([nodes, nxt], axis=0), jnp.stack([nxt, nodes], axis=0)], axis=1)
    adj = edge_index_to_dense_adj(edge_index, N)  # edge_weight = None -> 1.0

    params = init_params(k_p, input_dim, hidden_dim, num_layers)

    z, p = gconv_forward(x, adj, params)
    jax.block_until_ready((z, p))

    z_ref, p_ref = gconv_reference(x, adj, params)

    assert z.shape == (N, hidden_dim) and p.shape == (N, hidden_dim)
    assert jnp.all(jnp.isfinite(z)) and jnp.all(jnp.isfinite(p))
    # bf16 adjacency stream / bf16 inter-layer features round once per layer,
    # so the tolerance scales with encoder depth.
    tol = 0.05 * num_layers
    assert jnp.allclose(z, z_ref, atol=tol, rtol=tol)
    assert jnp.allclose(p, p_ref, atol=tol, rtol=tol)
    print("KERNEL_OK")
</pallas_src>

<mosaic_0001>
module attributes {stable_mosaic.version = 11 : i64} {
  func.func @_gin_kernel(%arg0: i32, %arg1: i32, %arg2: memref<128x256xbf16, #tpu.memory_space<vmem>>, %arg3: memref<256x128xbf16, #tpu.memory_space<vmem>>, %arg4: memref<128x128xf32, #tpu.memory_space<vmem>>, %arg5: memref<1x128xf32, #tpu.memory_space<vmem>>, %arg6: memref<128x128xf32, #tpu.memory_space<vmem>>, %arg7: memref<1x128xf32, #tpu.memory_space<vmem>>, %arg8: memref<1x1xf32, #tpu.memory_space<smem>>, %arg9: memref<128x128xbf16, #tpu.memory_space<vmem>>, %arg10: memref<128x128xf32, #tpu.memory_space<vmem>>) attributes {dimension_semantics = [#tpu.dimension_semantics<parallel>, #tpu.dimension_semantics<arbitrary>], iteration_bounds = array<i64: 2, 1>, scalar_prefetch = 0 : i64, scratch_operands = 1 : i64, tpu.core_type = #tpu.core_type<tc>, window_params = [{transform_indices = @transform_0, window_bounds = array<i64: 128, 256>}, {pipeline_mode = #tpu.pipeline_mode<synchronous>, transform_indices = @transform_1, window_bounds = array<i64: 256, 128>}, {pipeline_mode = #tpu.pipeline_mode<synchronous>, transform_indices = @transform_2, window_bounds = array<i64: 128, 128>}, {pipeline_mode = #tpu.pipeline_mode<synchronous>, transform_indices = @transform_3, window_bounds = array<i64: 1, 128>}, {pipeline_mode = #tpu.pipeline_mode<synchronous>, transform_indices = @transform_4, window_bounds = array<i64: 128, 128>}, {pipeline_mode = #tpu.pipeline_mode<synchronous>, transform_indices = @transform_5, window_bounds = array<i64: 1, 128>}, {transform_indices = @transform_6, window_bounds = array<i64: 1, 1>}, {transform_indices = @transform_7, window_bounds = array<i64: 128, 128>}]} {
    %c0_i32 = arith.constant 0 : i32
    %0 = arith.cmpi eq, %arg1, %c0_i32 : i32
    %1 = arith.extui %0 : i1 to i32
    %c0_i32_0 = arith.constant 0 : i32
    %2 = arith.cmpi ne, %1, %c0_i32_0 : i32
    scf.if %2 {
      %cst_9 = arith.constant 0.000000e+00 : f32
      %15 = vector.broadcast %cst_9 : f32 to vector<128x128xf32>
      %c0_10 = arith.constant 0 : index
      %c0_11 = arith.constant 0 : index
      %16 = vector.load %arg10[%c0_10, %c0_11] : memref<128x128xf32, #tpu.memory_space<vmem>>, vector<128x128xf32>
      tpu.vector_store %arg10[%c0_10, %c0_11], %15 {strides = array<i32>} : memref<128x128xf32, #tpu.memory_space<vmem>>, vector<128x128xf32>,
    } else {
    }
    %c256_i32 = arith.constant 256 : i32
    %3 = arith.muli %arg1, %c256_i32 : i32
    %4 = tpu.assume_multiple %3, 128 : i32
    %5 = arith.index_cast %4 : i32 to index
    %c0 = arith.constant 0 : index
    %6 = vector.load %arg3[%5, %c0] : memref<256x128xbf16, #tpu.memory_space<vmem>>, vector<256x128xbf16>
    %c0_1 = arith.constant 0 : index
    %c0_2 = arith.constant 0 : index
    %7 = vector.load %arg10[%c0_1, %c0_2] : memref<128x128xf32, #tpu.memory_space<vmem>>, vector<128x128xf32>
    %c0_3 = arith.constant 0 : index
    %c0_4 = arith.constant 0 : index
    %8 = vector.load %arg2[%c0_3, %c0_4] : memref<128x256xbf16, #tpu.memory_space<vmem>>, vector<128x256xbf16>
    %cst = arith.constant dense<0.000000e+00> : vector<128x128xf32>
    %9 = tpu.matmul %8, %6, %cst {dimension_numbers = #tpu.dot_dimension_numbers<[1], [0], [0], [1], [0, 0, 1, 1], [], []>} : vector<128x256xbf16>, vector<256x128xbf16>, vector<128x128xf32> -> vector<128x128xf32>
    %10 = arith.addf %7, %9 : vector<128x128xf32>
    %c0_5 = arith.constant 0 : index
    %c0_6 = arith.constant 0 : index
    %11 = vector.load %arg10[%c0_5, %c0_6] : memref<128x128xf32, #tpu.memory_space<vmem>>, vector<128x128xf32>
    tpu.vector_store %arg10[%c0_5, %c0_6], %10 {strides = array<i32>} : memref<128x128xf32, #tpu.memory_space<vmem>>, vector<128x128xf32>,
    %c0_i32_7 = arith.constant 0 : i32
    %12 = arith.cmpi eq, %arg1, %c0_i32_7 : i32
    %13 = arith.extui %12 : i1 to i32
    %c0_i32_8 = arith.constant 0 : i32
    %14 = arith.cmpi ne, %13, %c0_i32_8 : i32
    scf.if %14 {
      %c0_9 = arith.constant 0 : index
      %c0_10 = arith.constant 0 : index
      %15 = vector.load %arg10[%c0_9, %c0_10] : memref<128x128xf32, #tpu.memory_space<vmem>>, vector<128x128xf32>
      %c0_11 = arith.constant 0 : index
      %c0_12 = arith.constant 0 : index
      %16 = vector.load %arg4[%c0_11, %c0_12] : memref<128x128xf32, #tpu.memory_space<vmem>>, vector<128x128xf32>
      %cst_13 = arith.constant dense<0.000000e+00> : vector<128x128xf32>
      %17 = tpu.matmul %15, %16, %cst_13 {dimension_numbers = #tpu.dot_dimension_numbers<[1], [0], [0], [1], [0, 0, 1, 1], [], []>} : vector<128x128xf32>, vector<128x128xf32>, vector<128x128xf32> -> vector<128x128xf32>
      %c0_14 = arith.constant 0 : index
      %c0_15 = arith.constant 0 : index
      %18 = vector.load %arg5[%c0_14, %c0_15] : memref<1x128xf32, #tpu.memory_space<vmem>>, vector<1x128xf32>
      %19 = vector.broadcast %18 : vector<1x128xf32> to vector<128x128xf32>
      %20 = arith.addf %17, %19 : vector<128x128xf32>
      %cst_16 = arith.constant 0.000000e+00 : f32
      %21 = vector.broadcast %cst_16 : f32 to vector<128x128xf32>
      %22 = arith.maximumf %20, %21 : vector<128x128xf32>
      %c0_17 = arith.constant 0 : index
      %c0_18 = arith.constant 0 : index
      %23 = vector.load %arg6[%c0_17, %c0_18] : memref<128x128xf32, #tpu.memory_space<vmem>>, vector<128x128xf32>
      %cst_19 = arith.constant dense<0.000000e+00> : vector<128x128xf32>
      %24 = tpu.matmul %22, %23, %cst_19 {dimension_numbers = #tpu.dot_dimension_numbers<[1], [0], [0], [1], [0, 0, 1, 1], [], []>} : vector<128x128xf32>, vector<128x128xf32>, vector<128x128xf32> -> vector<128x128xf32>
      %c0_20 = arith.constant 0 : index
      %c0_21 = arith.constant 0 : index
      %25 = vector.load %arg7[%c0_20, %c0_21] : memref<1x128xf32, #tpu.memory_space<vmem>>, vector<1x128xf32>
      %26 = vector.broadcast %25 : vector<1x128xf32> to vector<128x128xf32>
      %27 = arith.addf %24, %26 : vector<128x128xf32>
      %c0_22 = arith.constant 0 : index
      %c0_23 = arith.constant 0 : index
      %28 = memref.load %arg8[%c0_22, %c0_23] : memref<1x1xf32, #tpu.memory_space<smem>>
      %cst_24 = arith.constant 0.000000e+00 : f32
      %29 = vector.broadcast %cst_24 : f32 to vector<128x128xf32>
      %30 = arith.cmpf ogt, %27, %29 : vector<128x128xf32>
      %31 = vector.broadcast %28 : f32 to vector<128x128xf32>
      %32 = arith.mulf %31, %27 : vector<128x128xf32>
      %33 = arith.select %30, %27, %32 : vector<128x128xi1>, vector<128x128xf32>
      %34 = arith.truncf %33 : vector<128x128xf32> to vector<128x128xbf16>
      %c0_25 = arith.constant 0 : index
      %c0_26 = arith.constant 0 : index
      %35 = vector.load %arg9[%c0_25, %c0_26] : memref<128x128xbf16, #tpu.memory_space<vmem>>, vector<128x128xbf16>
      tpu.vector_store %arg9[%c0_25, %c0_26], %34 {strides = array<i32>} : memref<128x128xbf16, #tpu.memory_space<vmem>>, vector<128x128xbf16>,
    } else {
    }
    return
  }
  func.func @transform_0(%arg0: i32, %arg1: i32) -> (i32, i32) {
    %c0_i32 = arith.constant 0 : i32
    return %arg0, %arg1 : i32, i32
  }
  func.func @transform_1(%arg0: i32, %arg1: i32) -> (i32, i32) {
    %c0_i32 = arith.constant 0 : i32
    %c0_i32_0 = arith.constant 0 : i32
    %c0_i32_1 = arith.constant 0 : i32
    return %c0_i32, %c0_i32_0 : i32, i32
  }
  func.func @transform_2(%arg0: i32, %arg1: i32) -> (i32, i32) {
    %c0_i32 = arith.constant 0 : i32
    %c0_i32_0 = arith.constant 0 : i32
    %c0_i32_1 = arith.constant 0 : i32
    return %c0_i32, %c0_i32_0 : i32, i32
  }
  func.func @transform_3(%arg0: i32, %arg1: i32) -> (i32, i32) {
    %c0_i32 = arith.constant 0 : i32
    %c0_i32_0 = arith.constant 0 : i32
    %c0_i32_1 = arith.constant 0 : i32
    return %c0_i32, %c0_i32_0 : i32, i32
  }
  func.func @transform_4(%arg0: i32, %arg1: i32) -> (i32, i32) {
    %c0_i32 = arith.constant 0 : i32
    %c0_i32_0 = arith.constant 0 : i32
    %c0_i32_1 = arith.constant 0 : i32
    return %c0_i32, %c0_i32_0 : i32, i32
  }
  func.func @transform_5(%arg0: i32, %arg1: i32) -> (i32, i32) {
    %c0_i32 = arith.constant 0 : i32
    %c0_i32_0 = arith.constant 0 : i32
    %c0_i32_1 = arith.constant 0 : i32
    return %c0_i32, %c0_i32_0 : i32, i32
  }
  func.func @transform_6(%arg0: i32, %arg1: i32) -> (i32, i32) {
    %c0_i32 = arith.constant 0 : i32
    %c0_i32_0 = arith.constant 0 : i32
    %c0_i32_1 = arith.constant 0 : i32
    return %c0_i32, %c0_i32_0 : i32, i32
  }
  func.func @transform_7(%arg0: i32, %arg1: i32) -> (i32, i32) {
    %c0_i32 = arith.constant 0 : i32
    %c0_i32_0 = arith.constant 0 : i32
    return %arg0, %c0_i32 : i32, i32
  }
}

</mosaic_0001>

<llo_original>
// kernel: tpu_custom_call.1
$region0: #{tpu_custom_call.1}
  #allocation0 [shape = 'u32[]', space=smem, size = 0x4, offset = 0x4, fixed_abs, tag = 'smem constant byte address 0x4 - core index']
  #allocation1 [shape = 'u32[72,128]{1,0:T(1,128)}', space=vmem, size = 0x9000, scoped, tag = 'internal scratch']
  #allocation2 [shape = 'f32[128,128]{1,0:T(8,128)}', space=vmem, size = 0x10000, scoped, tag = 'scratch operand']
  #allocation3 [shape = 'f32[1,1]{1,0:T(1,128)S(6)}', space=smem, size = 0x200, scoped, tag = 'scoped memory for tpu_custom_call.1']
  %s0 = inlined_call_operand.hbm [shape: bf16[256,256], index: 0, kind: input, shape index: {}]
  %s1 = inlined_call_operand.hbm [shape: bf16[256,128], index: 1, kind: input, shape index: {}]
  %s2 = inlined_call_operand.hbm [shape: f32[128,128], index: 2, kind: input, shape index: {}]
  %s3 = inlined_call_operand.vmem [shape: f32[1,128], index: 3, kind: input, shape index: {}]
  %s4 = inlined_call_operand.hbm [shape: f32[128,128], index: 4, kind: input, shape index: {}]
  %s5 = inlined_call_operand.vmem [shape: f32[1,128], index: 5, kind: input, shape index: {}]
  %s6 = inlined_call_operand.<no memory space> [shape: f32[1,1], index: 6, kind: input, shape index: {}]
  %s7 = inlined_call_operand.hbm [shape: bf16[256,128], index: 7, kind: output, shape index: {}]
  %s8 = sld [smem:[#allocation0]]
  $region85: #{tpu_custom_call.1} parent=0
    _
  %s10 = ssub.s32 1, %s8
  %s11 = scalar_select 0, %s10, %s8
  %12 = sst [smem:[#allocation3]] %s6
  $region1: #{tpu_custom_call.1} parent=0
    #allocation4 [shape = 'u8[131072]{0}', space=vmem, size = 0x20000, scoped, tag = 'input window, operand 0']
    #allocation5 [shape = 's32[2]{0}', space=sflag, size = 0x8, scoped, tag = 'scoped memory for tpu_custom_call.1']
    #allocation6 [shape = 's32[2]{0}', space=sflag, size = 0x8, scoped, tag = 'scoped memory for tpu_custom_call.1']
    #allocation7 [shape = 'u8[65536]{0}', space=vmem, size = 0x10000, scoped, tag = 'input window, operand 1, single buffered']
    #allocation8 [shape = 's32[1]{0}', space=sflag, size = 0x4, scoped, tag = 'scoped memory for tpu_custom_call.1']
    #allocation9 [shape = 'u8[65536]{0}', space=vmem, size = 0x10000, scoped, tag = 'input window, operand 2, single buffered']
    #allocation10 [shape = 'u8[65536]{0}', space=vmem, size = 0x10000, scoped, tag = 'input window, operand 4, single buffered']
    #allocation11 [shape = 's32[1]{0}', space=sflag, size = 0x4, scoped, tag = 'scoped memory for tpu_custom_call.1']
    #allocation12 [shape = 'u8[65536]{0}', space=vmem, size = 0x10000, scoped, tag = 'output window, operand 0']
    %13 = vsyncpa [#allocation5], 0
    %s14 = scalar_lea.sflag [#allocation5], 1
    %15 = vsyncpa %s14, 0
    %16 = vsyncpa [#allocation8], 0
    %17 = vsyncpa [#allocation11], 0
    %18 = vsyncpa [#allocation6], 0
    %s19 = scalar_lea.sflag [#allocation6], 1
    %20 = vsyncpa %s19, 0
    loop: start=0, step=1, limit=4
    $region2: #{tpu_custom_call.1} parent=1 // loop_pre_header
      _
    $region3: #{tpu_custom_call.1} parent=1 // loop_header
      %s22 = sphi 0, %s26
      %p23 = scmp.ge.s32.totalorder %s22, 4
      %s29 = sphi 0, %s41
      %s30 = sphi 0, %s37
      %s31 = sphi 0, %s29
      %s32 = sphi 0, %s30
      %s33 = sphi 0, %s31
      %s34 = sphi 0, %s32
      %s46 = sphi 0, %s48
      %s49 = sphi 0, %s46
      %s50 = sphi 0, %s49
      %s66 = sphi 0, %s50
      %s70 = sphi 0, %s70
      %s72 = sphi 0, %s70
      %s73 = sphi 0, %s72
      %s87 = sphi 0, %s73
      %s91 = sphi 0, %s91
      %s93 = sphi 0, %s91
      %s94 = sphi 0, %s93
      %s108 = sphi 0, %s94
      %s112 = sphi 0, %s112
      %s114 = sphi 0, %s112
      %s115 = sphi 0, %s114
      %s129 = sphi 0, %s115
      %s133 = sphi 0, %s133
      %s135 = sphi 0, %s133
      %s136 = sphi 0, %s135
      %s150 = sphi 0, %s136
      %s154 = sphi 0, %s154
      %s156 = sphi 0, %s154
      %s157 = sphi 0, %s156
      %s171 = sphi 0, %s157
      %s175 = sphi 0, %s175
      %s177 = sphi 0, %s175
      %s178 = sphi 0, %s177
      %s192 = sphi 0, %s178
      %s198 = sphi 0, %s200
      %s201 = sphi 0, %s198
      %s202 = sphi 0, %s201
      %s218 = sphi 0, %s202
    $region4: #{tpu_custom_call.1} parent=1 // loop_header_branch
      %25 = sbr.rel (%p23) target = $region8
    $region5: #{tpu_custom_call.1} parent=1 // loop_body
      %s27 = ssub.s32 %s22, 1
      %s28 = ssub.s32 %s22, 2
      %s35 = sadd.s32 1, %s30
      %p36 = scmp.ge.s32.totalorder %s35, 1
      %s37 = scalar_select %p36, 0, %s35
      %s38 = sadd.s32 1, %s29
      %s39 = scalar_select %p36, %s38, %s29
      %p40 = scmp.ge.s32.totalorder %s39, 2
      %s41 = scalar_select %p40, 0, %s39
      %s42 = ssub.s32 %s29, %s41
      %s43 = ssub.s32 %s30, %s37
      %s44 = sor.u32 %s42, %s43
      %p45 = scmp.eq.s32.totalorder %s44, 0
      %s47 = sadd.s32 %s46, 1
      %s48 = scalar_select %p45, %s46, %s47
      %p51 = pneg %p45
      %p52 = scmp.eq.s32.totalorder %s22, 1
      %p53 = por %p51, %p52
      %p54 = scmp.ne.s32.totalorder %s46, %s49
      %p55 = scmp.eq.s32.totalorder %s22, 0
      %p56 = por %p54, %p55
      %p57 = scmp.ne.s32.totalorder %s46, %s49
      %p58 = scmp.eq.s32.totalorder %s27, 1
      %p59 = por %p57, %p58
      %p60 = scmp.ne.s32.totalorder %s49, %s50
      %p61 = scmp.eq.s32.totalorder %s27, 0
      %p62 = por %p60, %p61
      %p63 = scmp.ne.s32.totalorder %s49, %s50
      %p64 = scmp.eq.s32.totalorder %s28, 1
      %p65 = por %p63, %p64
      %p67 = scmp.ne.s32.totalorder %s50, %s66
      %p68 = scmp.eq.s32.totalorder %s28, 0
      %p69 = por %p67, %p68
      %s71 = sadd.s32 %s70, 1
      %p74 = scmp.eq.s32.totalorder %s22, 1
      %p75 = scmp.ne.s32.totalorder %s70, %s72
      %p76 = scmp.eq.s32.totalorder %s22, 0
      %p77 = por %p75, %p76
      %p78 = scmp.ne.s32.totalorder %s70, %s72
      %p79 = scmp.eq.s32.totalorder %s27, 1
      %p80 = por %p78, %p79
      %p81 = scmp.ne.s32.totalorder %s72, %s73
      %p82 = scmp.eq.s32.totalorder %s27, 0
      %p83 = por %p81, %p82
      %p84 = scmp.ne.s32.totalorder %s72, %s73
      %p85 = scmp.eq.s32.totalorder %s28, 1
      %p86 = por %p84, %p85
      %p88 = scmp.ne.s32.totalorder %s73, %s87
      %p89 = scmp.eq.s32.totalorder %s28, 0
      %p90 = por %p88, %p89
      %s92 = sadd.s32 %s91, 1
      %p95 = scmp.eq.s32.totalorder %s22, 1
      %p96 = scmp.ne.s32.totalorder %s91, %s93
      %p97 = scmp.eq.s32.totalorder %s22, 0
      %p98 = por %p96, %p97
      %p99 = scmp.ne.s32.totalorder %s91, %s93
      %p100 = scmp.eq.s32.totalorder %s27, 1
      %p101 = por %p99, %p100
      %p102 = scmp.ne.s32.totalorder %s93, %s94
      %p103 = scmp.eq.s32.totalorder %s27, 0
      %p104 = por %p102, %p103
      %p105 = scmp.ne.s32.totalorder %s93, %s94
      %p106 = scmp.eq.s32.totalorder %s28, 1
      %p107 = por %p105, %p106
      %p109 = scmp.ne.s32.totalorder %s94, %s108
      %p110 = scmp.eq.s32.totalorder %s28, 0
      %p111 = por %p109, %p110
      %s113 = sadd.s32 %s112, 1
      %p116 = scmp.eq.s32.totalorder %s22, 1
      %p117 = scmp.ne.s32.totalorder %s112, %s114
      %p118 = scmp.eq.s32.totalorder %s22, 0
      %p119 = por %p117, %p118
      %p120 = scmp.ne.s32.totalorder %s112, %s114
      %p121 = scmp.eq.s32.totalorder %s27, 1
      %p122 = por %p120, %p121
      %p123 = scmp.ne.s32.totalorder %s114, %s115
      %p124 = scmp.eq.s32.totalorder %s27, 0
      %p125 = por %p123, %p124
      %p126 = scmp.ne.s32.totalorder %s114, %s115
      %p127 = scmp.eq.s32.totalorder %s28, 1
      %p128 = por %p126, %p127
      %p130 = scmp.ne.s32.totalorder %s115, %s129
      %p131 = scmp.eq.s32.totalorder %s28, 0
      %p132 = por %p130, %p131
      %s134 = sadd.s32 %s133, 1
      %p137 = scmp.eq.s32.totalorder %s22, 1
      %p138 = scmp.ne.s32.totalorder %s133, %s135
      %p139 = scmp.eq.s32.totalorder %s22, 0
      %p140 = por %p138, %p139
      %p141 = scmp.ne.s32.totalorder %s133, %s135
      %p142 = scmp.eq.s32.totalorder %s27, 1
      %p143 = por %p141, %p142
      %p144 = scmp.ne.s32.totalorder %s135, %s136
      %p145 = scmp.eq.s32.totalorder %s27, 0
      %p146 = por %p144, %p145
      %p147 = scmp.ne.s32.totalorder %s135, %s136
      %p148 = scmp.eq.s32.totalorder %s28, 1
      %p149 = por %p147, %p148
      %p151 = scmp.ne.s32.totalorder %s136, %s150
      %p152 = scmp.eq.s32.totalorder %s28, 0
      %p153 = por %p151, %p152
      %s155 = sadd.s32 %s154, 1
      %p158 = scmp.eq.s32.totalorder %s22, 1
      %p159 = scmp.ne.s32.totalorder %s154, %s156
      %p160 = scmp.eq.s32.totalorder %s22, 0
      %p161 = por %p159, %p160
      %p162 = scmp.ne.s32.totalorder %s154, %s156
      %p163 = scmp.eq.s32.totalorder %s27, 1
      %p164 = por %p162, %p163
      %p165 = scmp.ne.s32.totalorder %s156, %s157
      %p166 = scmp.eq.s32.totalorder %s27, 0
      %p167 = por %p165, %p166
      %p168 = scmp.ne.s32.totalorder %s156, %s157
      %p169 = scmp.eq.s32.totalorder %s28, 1
      %p170 = por %p168, %p169
      %p172 = scmp.ne.s32.totalorder %s157, %s171
      %p173 = scmp.eq.s32.totalorder %s28, 0
      %p174 = por %p172, %p173
      %s176 = sadd.s32 %s175, 1
      %p179 = scmp.eq.s32.totalorder %s22, 1
      %p180 = scmp.ne.s32.totalorder %s175, %s177
      %p181 = scmp.eq.s32.totalorder %s22, 0
      %p182 = por %p180, %p181
      %p183 = scmp.ne.s32.totalorder %s175, %s177
      %p184 = scmp.eq.s32.totalorder %s27, 1
      %p185 = por %p183, %p184
      %p186 = scmp.ne.s32.totalorder %s177, %s178
      %p187 = scmp.eq.s32.totalorder %s27, 0
      %p188 = por %p186, %p187
      %p189 = scmp.ne.s32.totalorder %s177, %s178
      %p190 = scmp.eq.s32.totalorder %s28, 1
      %p191 = por %p189, %p190
      %p193 = scmp.ne.s32.totalorder %s178, %s192
      %p194 = scmp.eq.s32.totalorder %s28, 0
      %p195 = por %p193, %p194
      %s196 = ssub.s32 %s29, %s41
      %p197 = scmp.eq.s32.totalorder %s196, 0
      %s199 = sadd.s32 %s198, 1
      %s200 = scalar_select %p197, %s198, %s199
      %p203 = pneg %p197
      %p204 = scmp.eq.s32.totalorder %s22, 1
      %p205 = por %p203, %p204
      %p206 = scmp.ne.s32.totalorder %s198, %s201
      %p207 = scmp.eq.s32.totalorder %s22, 0
      %p208 = por %p206, %p207
      %p209 = scmp.ne.s32.totalorder %s198, %s201
      %p210 = scmp.eq.s32.totalorder %s27, 1
      %p211 = por %p209, %p210
      %p212 = scmp.ne.s32.totalorder %s201, %s202
      %p213 = scmp.eq.s32.totalorder %s27, 0
      %p214 = por %p212, %p213
      %p215 = scmp.ne.s32.totalorder %s201, %s202
      %p216 = scmp.eq.s32.totalorder %s28, 1
      %p217 = por %p215, %p216
      %p219 = scmp.ne.s32.totalorder %s202, %s218
      %p220 = scmp.eq.s32.totalorder %s28, 0
      %p221 = por %p219, %p220
      %p222 = scmp.le.s32.totalorder 1, %s22
      %p223 = scmp.lt.s32.totalorder %s22, 3
      %p224 = pnand %p222, %p223
      %p225 = pneg %p224
      // Predicated region
      $region9: #{tpu_custom_call.1} parent=5 // pred_check
        _
      $region10: #{tpu_custom_call.1} parent=5 // pred_check_branch
        %227 = sbr.rel (%p224) target = $region12
      $region11: #{tpu_custom_call.1} parent=5 // pred_region
        %s228 = ssub.s32 %s22, 1
        // Predicated region
        $region13: #{tpu_custom_call.1} parent=11 // pred_check
          %p229 = pneg %p83
        $region14: #{tpu_custom_call.1} parent=11 // pred_check_branch
          %231 = sbr.rel (%p229) target = $region16
        $region15: #{tpu_custom_call.1} parent=11 // pred_region
          %233 = vsyncadd [#allocation8], 0
          %s234 = sshll.u32 %s1, 4
          %s235 = int_to_ptr.hbm [resolvable:$true] %s234
          %s236 = sshll.u32 [#allocation7], 4
          %s237 = int_to_ptr.vmem [resolvable:$true] %s236
          %242 = dma.hbm_to_vmem [thread:$0]  %s235, 2048, %s237, [#allocation8], 64, 64, 4
        $region16: #{tpu_custom_call.1} parent=11 // pred_fallthru
          _
        // Predicated region
        $region17: #{tpu_custom_call.1} parent=11 // pred_check
          %p243 = pneg %p104
        $region18: #{tpu_custom_call.1} parent=11 // pred_check_branch
          %245 = sbr.rel (%p243) target = $region20
        $region19: #{tpu_custom_call.1} parent=11 // pred_region
          %247 = vsyncadd [#allocation8], 0
          %s248 = sshll.u32 %s2, 4
          %s249 = int_to_ptr.hbm [resolvable:$true] %s248
          %s250 = sshll.u32 [#allocation9], 4
          %s251 = int_to_ptr.vmem [resolvable:$true] %s250
          %256 = dma.hbm_to_vmem [thread:$0]  %s249, 2048, %s251, [#allocation8], 128, 128, 8
        $region20: #{tpu_custom_call.1} parent=11 // pred_fallthru
          _
        // Predicated region
        $region21: #{tpu_custom_call.1} parent=11 // pred_check
          %p257 = pneg %p125
        $region22: #{tpu_custom_call.1} parent=11 // pred_check_branch
          %259 = sbr.rel (%p257) target = $region24
        $region23: #{tpu_custom_call.1} parent=11 // pred_region
          _
        $region24: #{tpu_custom_call.1} parent=11 // pred_fallthru
          _
        // Predicated region
        $region25: #{tpu_custom_call.1} parent=11 // pred_check
          %p260 = pneg %p146
        $region26: #{tpu_custom_call.1} parent=11 // pred_check_branch
          %262 = sbr.rel (%p260) target = $region28
        $region27: #{tpu_custom_call.1} parent=11 // pred_region
          %264 = vsyncadd [#allocation11], 0
          %s265 = sshll.u32 %s4, 4
          %s266 = int_to_ptr.hbm [resolvable:$true] %s265
          %s267 = sshll.u32 [#allocation10], 4
          %s268 = int_to_ptr.vmem [resolvable:$true] %s267
          %273 = dma.hbm_to_vmem [thread:$0]  %s266, 2048, %s268, [#allocation11], 128, 128, 8
        $region28: #{tpu_custom_call.1} parent=11 // pred_fallthru
          _
        // Predicated region
        $region29: #{tpu_custom_call.1} parent=11 // pred_check
          %p274 = pneg %p167
        $region30: #{tpu_custom_call.1} parent=11 // pred_check_branch
          %276 = sbr.rel (%p274) target = $region32
        $region31: #{tpu_custom_call.1} parent=11 // pred_region
          _
        $region32: #{tpu_custom_call.1} parent=11 // pred_fallthru
          _
        // Predicated region
        $region33: #{tpu_custom_call.1} parent=11 // pred_check
          %p277 = pneg %p188
        $region34: #{tpu_custom_call.1} parent=11 // pred_check_branch
          %279 = sbr.rel (%p277) target = $region36
        $region35: #{tpu_custom_call.1} parent=11 // pred_region
          _
        $region36: #{tpu_custom_call.1} parent=11 // pred_fallthru
          _
      $region12: #{tpu_custom_call.1} parent=5 // pred_fallthru
        _
      %p280 = scmp.lt.s32.totalorder %s22, 2
      // Predicated region
      $region37: #{tpu_custom_call.1} parent=5 // pred_check
        %p281 = pneg %p280
      $region38: #{tpu_custom_call.1} parent=5 // pred_check_branch
        %283 = sbr.rel (%p281) target = $region40
      $region39: #{tpu_custom_call.1} parent=5 // pred_region
        // Predicated region
        $region41: #{tpu_custom_call.1} parent=39 // pred_check
          %p284 = pneg %p56
        $region42: #{tpu_custom_call.1} parent=39 // pred_check_branch
          %286 = sbr.rel (%p284) target = $region44
        $region43: #{tpu_custom_call.1} parent=39 // pred_region
          %s287 = sand.u32 %s46, 1
          %s288 = scalar_lea.sflag [#allocation5], %s287
          %s289 = sand.u32 %s46, 1
          %s290 = smul.addr %s289, 128
          %s291 = scalar_lea.vmem [#allocation4], %s290
          %s292 = smul.u32 16, %s29
          %s293 = smul.u32 2, %s30
          %295 = vsyncadd %s288, 0
          %s296 = smul.addr %s292, 2
          %s297 = sadd.s32 %s293, %s296
          %s298 = smul.addr %s297, 4
          %s299 = scalar_lea.hbm %s0, %s298
          %s300 = sshll.u32 %s299, 4
          %s301 = int_to_ptr.hbm [resolvable:$true] %s300
          %s302 = sshll.u32 %s291, 4
          %s303 = int_to_ptr.vmem [resolvable:$true] %s302
          %308 = dma.hbm_to_vmem [thread:$0]  %s301, 2048, %s303, %s288, 128, 128, 8
        $region44: #{tpu_custom_call.1} parent=39 // pred_fallthru
          _
      $region40: #{tpu_custom_call.1} parent=5 // pred_fallthru
        _
      %p309 = scmp.le.s32.totalorder 1, %s22
      %p310 = scmp.lt.s32.totalorder %s22, 3
      %p311 = pnand %p309, %p310
      %p312 = pneg %p311
      // Predicated region
      $region45: #{tpu_custom_call.1} parent=5 // pred_check
        _
      $region46: #{tpu_custom_call.1} parent=5 // pred_check_branch
        %314 = sbr.rel (%p311) target = $region48
      $region47: #{tpu_custom_call.1} parent=5 // pred_region
        %s315 = ssub.s32 %s22, 1
        %s316 = sand.u32 %s49, 1
        %s317 = scalar_lea.sflag [#allocation5], %s316
        %s318 = sand.u32 %s49, 1
        %s319 = smul.addr %s318, 128
        %s320 = scalar_lea.vmem [#allocation4], %s319
        // Predicated region
        $region49: #{tpu_custom_call.1} parent=47 // pred_check
          %p321 = pneg %p62
        $region50: #{tpu_custom_call.1} parent=47 // pred_check_branch
          %323 = sbr.rel (%p321) target = $region52
        $region51: #{tpu_custom_call.1} parent=47 // pred_region
          %325 = dma.done %s317, 2048
        $region52: #{tpu_custom_call.1} parent=47 // pred_fallthru
          _
        // Predicated region
        $region53: #{tpu_custom_call.1} parent=47 // pred_check
          %p326 = pneg %p83
        $region54: #{tpu_custom_call.1} parent=47 // pred_check_branch
          %328 = sbr.rel (%p326) target = $region56
        $region55: #{tpu_custom_call.1} parent=47 // pred_region
          %330 = dma.done [#allocation8], 2048
        $region56: #{tpu_custom_call.1} parent=47 // pred_fallthru
          _
        // Predicated region
        $region57: #{tpu_custom_call.1} parent=47 // pred_check
          %p331 = pneg %p104
        $region58: #{tpu_custom_call.1} parent=47 // pred_check_branch
          %333 = sbr.rel (%p331) target = $region60
        $region59: #{tpu_custom_call.1} parent=47 // pred_region
          %335 = dma.done [#allocation8], 2048
        $region60: #{tpu_custom_call.1} parent=47 // pred_fallthru
          _
        // Predicated region
        $region61: #{tpu_custom_call.1} parent=47 // pred_check
          %p336 = pneg %p146
        $region62: #{tpu_custom_call.1} parent=47 // pred_check_branch
          %338 = sbr.rel (%p336) target = $region64
        $region63: #{tpu_custom_call.1} parent=47 // pred_region
          %340 = dma.done [#allocation11], 2048
        $region64: #{tpu_custom_call.1} parent=47 // pred_fallthru
          _
        %s341 = sand.u32 %s49, 1
        %s342 = scalar_lea.sflag [#allocation5], %s341
        %s343 = sand.u32 %s49, 1
        %s344 = smul.addr %s343, 128
        %s345 = scalar_lea.vmem [#allocation4], %s344
        %p346 = pneg %p62
        %p347 = pneg %p59
        %p348 = pneg %p83
        %p349 = pneg %p80
        %p350 = pneg %p104
        %p351 = pneg %p101
        %p352 = pneg %p125
        %p353 = pneg %p122
        %p354 = pneg %p146
        %p355 = pneg %p143
        %p356 = pneg %p167
        %p357 = pneg %p164
        %p358 = pneg %p188
        %p359 = pneg %p185
        %p360 = pneg %p214
        %p361 = pneg %p211
        %s362 = sand.u32 %s201, 1
        %s363 = scalar_lea.sflag [#allocation6], %s362
        %s364 = sand.u32 %s201, 1
        %s365 = smul.addr %s364, 64
        %s366 = scalar_lea.vmem [#allocation12], %s365
        %s367 = smul.u32 16, %s31
        %s368 = smul.u32 2, %s32
        %s369 = smul.u32 16, %s31
        %p370 = scmp.eq.s32.totalorder %s32, 0
        // Predicated region
        $region65: #{tpu_custom_call.1} parent=47 // pred_check
          %p371 = pneg %p370
        $region66: #{tpu_custom_call.1} parent=47 // pred_check_branch
          %373 = sbr.rel (%p371) target = $region68
        $region67: #{tpu_custom_call.1} parent=47 // pred_region
          %374 = vst [vmem:[#allocation2] sm:$0xff] 0.0
          %375 = vst [vmem:[#allocation2 + $0x8] sm:$0xff] 0.0
          %376 = vst [vmem:[#allocation2 + $0x10] sm:$0xff] 0.0
          %377 = vst [vmem:[#allocation2 + $0x18] sm:$0xff] 0.0
          %378 = vst [vmem:[#allocation2 + $0x20] sm:$0xff] 0.0
          %379 = vst [vmem:[#allocation2 + $0x28] sm:$0xff] 0.0
          %380 = vst [vmem:[#allocation2 + $0x30] sm:$0xff] 0.0
          %381 = vst [vmem:[#allocation2 + $0x38] sm:$0xff] 0.0
          %382 = vst [vmem:[#allocation2 + $0x40] sm:$0xff] 0.0
          %383 = vst [vmem:[#allocation2 + $0x48] sm:$0xff] 0.0
          %384 = vst [vmem:[#allocation2 + $0x50] sm:$0xff] 0.0
          %385 = vst [vmem:[#allocation2 + $0x58] sm:$0xff] 0.0
          %386 = vst [vmem:[#allocation2 + $0x60] sm:$0xff] 0.0
          %387 = vst [vmem:[#allocation2 + $0x68] sm:$0xff] 0.0
          %388 = vst [vmem:[#allocation2 + $0x70] sm:$0xff] 0.0
          %389 = vst [vmem:[#allocation2 + $0x78] sm:$0xff] 0.0
        $region68: #{tpu_custom_call.1} parent=47 // pred_fallthru
          _
        %s390 = smul.u32 %s32, 256
        %s391 = sshra.s32 %s390, 3
        %s392 = sand.u32 %s390, 7
        %s393 = smul.addr %s391, 4
        %s394 = scalar_lea.vmem [#allocation7], %s393
        %v395 = vld [vmem:[%s394] sm:$0xf]
        %v396 = vld [vmem:[%s394 + $0x4] sm:$0xf]
        %v397 = vld [vmem:[%s394 + $0x8] sm:$0xf]
        %v398 = vld [vmem:[%s394 + $0xc] sm:$0xf]
        %v399 = vld [vmem:[%s394 + $0x10] sm:$0xf]
        %v400 = vld [vmem:[%s394 + $0x14] sm:$0xf]
        %v401 = vld [vmem:[%s394 + $0x18] sm:$0xf]
        %v402 = vld [vmem:[%s394 + $0x1c] sm:$0xf]
        %v403 = vld [vmem:[%s394 + $0x20] sm:$0xf]
        %v404 = vld [vmem:[%s394 + $0x24] sm:$0xf]
        %v405 = vld [vmem:[%s394 + $0x28] sm:$0xf]
        %v406 = vld [vmem:[%s394 + $0x2c] sm:$0xf]
        %v407 = vld [vmem:[%s394 + $0x30] sm:$0xf]
        %v408 = vld [vmem:[%s394 + $0x34] sm:$0xf]
        %v409 = vld [vmem:[%s394 + $0x38] sm:$0xf]
        %v410 = vld [vmem:[%s394 + $0x3c] sm:$0xf]
        %v411 = vld [vmem:[%s394 + $0x40] sm:$0xf]
        %v412 = vld [vmem:[%s394 + $0x44] sm:$0xf]
        %v413 = vld [vmem:[%s394 + $0x48] sm:$0xf]
        %v414 = vld [vmem:[%s394 + $0x4c] sm:$0xf]
        %v415 = vld [vmem:[%s394 + $0x50] sm:$0xf]
        %v416 = vld [vmem:[%s394 + $0x54] sm:$0xf]
        %v417 = vld [vmem:[%s394 + $0x58] sm:$0xf]
        %v418 = vld [vmem:[%s394 + $0x5c] sm:$0xf]
        %v419 = vld [vmem:[%s394 + $0x60] sm:$0xf]
        %v420 = vld [vmem:[%s394 + $0x64] sm:$0xf]
        %v421 = vld [vmem:[%s394 + $0x68] sm:$0xf]
        %v422 = vld [vmem:[%s394 + $0x6c] sm:$0xf]
        %v423 = vld [vmem:[%s394 + $0x70] sm:$0xf]
        %v424 = vld [vmem:[%s394 + $0x74] sm:$0xf]
        %v425 = vld [vmem:[%s394 + $0x78] sm:$0xf]
        %v426 = vld [vmem:[%s394 + $0x7c] sm:$0xf]
        %v427 = vld [vmem:[#allocation2] sm:$0xff]
        %v428 = vld [vmem:[#allocation2 + $0x8] sm:$0xff]
        %v429 = vld [vmem:[#allocation2 + $0x10] sm:$0xff]
        %v430 = vld [vmem:[#allocation2 + $0x18] sm:$0xff]
        %v431 = vld [vmem:[#allocation2 + $0x20] sm:$0xff]
        %v432 = vld [vmem:[#allocation2 + $0x28] sm:$0xff]
        %v433 = vld [vmem:[#allocation2 + $0x30] sm:$0xff]
        %v434 = vld [vmem:[#allocation2 + $0x38] sm:$0xff]
        %v435 = vld [vmem:[#allocation2 + $0x40] sm:$0xff]
        %v436 = vld [vmem:[#allocation2 + $0x48] sm:$0xff]
        %v437 = vld [vmem:[#allocation2 + $0x50] sm:$0xff]
        %v438 = vld [vmem:[#allocation2 + $0x58] sm:$0xff]
        %v439 = vld [vmem:[#allocation2 + $0x60] sm:$0xff]
        %v440 = vld [vmem:[#allocation2 + $0x68] sm:$0xff]
        %v441 = vld [vmem:[#allocation2 + $0x70] sm:$0xff]
        %v442 = vld [vmem:[#allocation2 + $0x78] sm:$0xff]
        %v443 = vld [vmem:[%s320] sm:$0xff]
        %v444 = vld [vmem:[%s320 + $0x8] sm:$0xff]
        %v445 = vld [vmem:[%s320 + $0x10] sm:$0xff]
        %v446 = vld [vmem:[%s320 + $0x18] sm:$0xff]
        %v447 = vld [vmem:[%s320 + $0x20] sm:$0xff]
        %v448 = vld [vmem:[%s320 + $0x28] sm:$0xff]
        %v449 = vld [vmem:[%s320 + $0x30] sm:$0xff]
        %v450 = vld [vmem:[%s320 + $0x38] sm:$0xff]
        %v451 = vld [vmem:[%s320 + $0x40] sm:$0xff]
        %v452 = vld [vmem:[%s320 + $0x48] sm:$0xff]
        %v453 = vld [vmem:[%s320 + $0x50] sm:$0xff]
        %v454 = vld [vmem:[%s320 + $0x58] sm:$0xff]
        %v455 = vld [vmem:[%s320 + $0x60] sm:$0xff]
        %v456 = vld [vmem:[%s320 + $0x68] sm:$0xff]
        %v457 = vld [vmem:[%s320 + $0x70] sm:$0xff]
        %v458 = vld [vmem:[%s320 + $0x78] sm:$0xff]
        %v475 = vunpack.c.l.b16 %v443
        %v476 = vunpack.c.h.b16 %v443
        %v477 = vunpack.c.l.b16 %v444
        %v478 = vunpack.c.h.b16 %v444
        %v479 = vunpack.c.l.b16 %v445
        %v480 = vunpack.c.h.b16 %v445
        %v481 = vunpack.c.l.b16 %v446
        %v482 = vunpack.c.h.b16 %v446
        %v483 = vunpack.c.l.b16 %v447
        %v484 = vunpack.c.h.b16 %v447
        %v485 = vunpack.c.l.b16 %v448
        %v486 = vunpack.c.h.b16 %v448
        %v487 = vunpack.c.l.b16 %v449
        %v488 = vunpack.c.h.b16 %v449
        %v489 = vunpack.c.l.b16 %v450
        %v490 = vunpack.c.h.b16 %v450
        %v491 = vunpack.c.l.b16 %v451
        %v492 = vunpack.c.h.b16 %v451
        %v493 = vunpack.c.l.b16 %v452
        %v494 = vunpack.c.h.b16 %v452
        %v495 = vunpack.c.l.b16 %v453
        %v496 = vunpack.c.h.b16 %v453
        %v497 = vunpack.c.l.b16 %v454
        %v498 = vunpack.c.h.b16 %v454
        %v499 = vunpack.c.l.b16 %v455
        %v500 = vunpack.c.h.b16 %v455
        %v501 = vunpack.c.l.b16 %v456
        %v502 = vunpack.c.h.b16 %v456
        %v503 = vunpack.c.l.b16 %v457
        %v504 = vunpack.c.h.b16 %v457
        %v505 = vunpack.c.l.b16 %v458
        %v506 = vunpack.c.h.b16 %v458
        %v507 = vpack.c.b16 %v477, %v475
        %v508 = vpack.c.b16 %v478, %v476
        %v509 = vpack.c.b16 %v481, %v479
        %v510 = vpack.c.b16 %v482, %v480
        %v511 = vpack.c.b16 %v485, %v483
        %v512 = vpack.c.b16 %v486, %v484
        %v513 = vpack.c.b16 %v489, %v487
        %v514 = vpack.c.b16 %v490, %v488
        %v515 = vpack.c.b16 %v493, %v491
        %v516 = vpack.c.b16 %v494, %v492
        %v517 = vpack.c.b16 %v497, %v495
        %v518 = vpack.c.b16 %v498, %v496
        %v519 = vpack.c.b16 %v501, %v499
        %v520 = vpack.c.b16 %v502, %v500
        %v521 = vpack.c.b16 %v505, %v503
        %v522 = vpack.c.b16 %v506, %v504
        %v571 = vunpack.c.l.b16 %v395
        %v572 = vunpack.c.l.b16 %v396
        %v573 = vunpack.c.l.b16 %v397
        %v574 = vunpack.c.l.b16 %v398
        %v575 = vunpack.c.l.b16 %v399
        %v576 = vunpack.c.l.b16 %v400
        %v577 = vunpack.c.l.b16 %v401
        %v578 = vunpack.c.l.b16 %v402
        %v579 = vunpack.c.l.b16 %v403
        %v580 = vunpack.c.l.b16 %v404
        %v581 = vunpack.c.l.b16 %v405
        %v582 = vunpack.c.l.b16 %v406
        %v583 = vunpack.c.l.b16 %v407
        %v584 = vunpack.c.l.b16 %v408
        %v585 = vunpack.c.l.b16 %v409
        %v586 = vunpack.c.l.b16 %v410
        %v587 = vunpack.c.l.b16 %v411
        %v588 = vunpack.c.l.b16 %v412
        %v589 = vunpack.c.l.b16 %v413
        %v590 = vunpack.c.l.b16 %v414
        %v591 = vunpack.c.l.b16 %v415
        %v592 = vunpack.c.l.b16 %v416
        %v593 = vunpack.c.l.b16 %v417
        %v594 = vunpack.c.l.b16 %v418
        %v595 = vunpack.c.l.b16 %v419
        %v596 = vunpack.c.l.b16 %v420
        %v597 = vunpack.c.l.b16 %v421
        %v598 = vunpack.c.l.b16 %v422
        %v599 = vunpack.c.l.b16 %v423
        %v600 = vunpack.c.l.b16 %v424
        %v601 = vunpack.c.l.b16 %v425
        %v602 = vunpack.c.l.b16 %v426
        %v603 = vpack.c.b16 %v572, %v571
        %v604 = vpack.c.b16 %v574, %v573
        %v605 = vpack.c.b16 %v576, %v575
        %v606 = vpack.c.b16 %v578, %v577
        %v607 = vpack.c.b16 %v580, %v579
        %v608 = vpack.c.b16 %v582, %v581
        %v609 = vpack.c.b16 %v584, %v583
        %v610 = vpack.c.b16 %v586, %v585
        %v611 = vpack.c.b16 %v588, %v587
        %v612 = vpack.c.b16 %v590, %v589
        %v613 = vpack.c.b16 %v592, %v591
        %v614 = vpack.c.b16 %v594, %v593
        %v615 = vpack.c.b16 %v596, %v595
        %v616 = vpack.c.b16 %v598, %v597
        %v617 = vpack.c.b16 %v600, %v599
        %v618 = vpack.c.b16 %v602, %v601
        %635 = vmatpush.bf16.msra.mxu0 %v610
        %636 = vmatpush.bf16.msra.mxu0 %v609
        %637 = vmatpush.bf16.msra.mxu0 %v608
        %638 = vmatpush.bf16.msra.mxu0 %v607
        %639 = vmatpush.bf16.msra.mxu0 %v606
        %640 = vmatpush.bf16.msra.mxu0 %v605
        %641 = vmatpush.bf16.msra.mxu0 %v604
        %642 = vmatpush.bf16.msra.mxu0 %v603
        %643 = vmatmul.bf16.gmra.mxu0 %v507
        %v644 = vpop.f32.mrf.mxu0
        %v645 = vadd.f32 0.0, %v644
        %v646 = vpop.f32.mrf.mxu0
        %v647 = vadd.f32 0.0, %v646
        %648 = vmatmul.bf16.gmra.mxu0 %v509
        %v649 = vpop.f32.mrf.mxu0
        %v650 = vadd.f32 0.0, %v649
        %v651 = vpop.f32.mrf.mxu0
        %v652 = vadd.f32 0.0, %v651
        %653 = vmatmul.bf16.gmra.mxu0 %v511
        %v654 = vpop.f32.mrf.mxu0
        %v655 = vadd.f32 0.0, %v654
        %v656 = vpop.f32.mrf.mxu0
        %v657 = vadd.f32 0.0, %v656
        %658 = vmatmul.bf16.gmra.mxu0 %v513
        %v659 = vpop.f32.mrf.mxu0
        %v660 = vadd.f32 0.0, %v659
        %v661 = vpop.f32.mrf.mxu0
        %v662 = vadd.f32 0.0, %v661
        %663 = vmatmul.bf16.gmra.mxu0 %v515
        %v664 = vpop.f32.mrf.mxu0
        %v665 = vadd.f32 0.0, %v664
        %v666 = vpop.f32.mrf.mxu0
        %v667 = vadd.f32 0.0, %v666
        %668 = vmatmul.bf16.gmra.mxu0 %v517
        %v669 = vpop.f32.mrf.mxu0
        %v670 = vadd.f32 0.0, %v669
        %v671 = vpop.f32.mrf.mxu0
        %v672 = vadd.f32 0.0, %v671
        %673 = vmatmul.bf16.gmra.mxu0 %v519
        %v674 = vpop.f32.mrf.mxu0
        %v675 = vadd.f32 0.0, %v674
        %v676 = vpop.f32.mrf.mxu0
        %v677 = vadd.f32 0.0, %v676
        %678 = vmatmul.bf16.gmra.mxu0 %v521
        %v679 = vpop.f32.mrf.mxu0
        %v680 = vadd.f32 0.0, %v679
        %v681 = vpop.f32.mrf.mxu0
        %v682 = vadd.f32 0.0, %v681
        %683 = vdwg.mxu0
        %684 = vmatpush.bf16.msra.mxu0 %v618
        %685 = vmatpush.bf16.msra.mxu0 %v617
        %686 = vmatpush.bf16.msra.mxu0 %v616
        %687 = vmatpush.bf16.msra.mxu0 %v615
        %688 = vmatpush.bf16.msra.mxu0 %v614
        %689 = vmatpush.bf16.msra.mxu0 %v613
        %690 = vmatpush.bf16.msra.mxu0 %v612
        %691 = vmatpush.bf16.msra.mxu0 %v611
        %692 = vmatmul.bf16.gmra.mxu0 %v508
        %v693 = vpop.f32.mrf.mxu0
        %v694 = vadd.f32 %v645, %v693
        %v695 = vpop.f32.mrf.mxu0
        %v696 = vadd.f32 %v647, %v695
        %697 = vmatmul.bf16.gmra.mxu0 %v510
        %v698 = vpop.f32.mrf.mxu0
        %v699 = vadd.f32 %v650, %v698
        %v700 = vpop.f32.mrf.mxu0
        %v701 = vadd.f32 %v652, %v700
        %702 = vmatmul.bf16.gmra.mxu0 %v512
        %v703 = vpop.f32.mrf.mxu0
        %v704 = vadd.f32 %v655, %v703
        %v705 = vpop.f32.mrf.mxu0
        %v706 = vadd.f32 %v657, %v705
        %707 = vmatmul.bf16.gmra.mxu0 %v514
        %v708 = vpop.f32.mrf.mxu0
        %v709 = vadd.f32 %v660, %v708
        %v710 = vpop.f32.mrf.mxu0
        %v711 = vadd.f32 %v662, %v710
        %712 = vmatmul.bf16.gmra.mxu0 %v516
        %v713 = vpop.f32.mrf.mxu0
        %v714 = vadd.f32 %v665, %v713
        %v715 = vpop.f32.mrf.mxu0
        %v716 = vadd.f32 %v667, %v715
        %717 = vmatmul.bf16.gmra.mxu0 %v518
        %v718 = vpop.f32.mrf.mxu0
        %v719 = vadd.f32 %v670, %v718
        %v720 = vpop.f32.mrf.mxu0
        %v721 = vadd.f32 %v672, %v720
        %722 = vmatmul.bf16.gmra.mxu0 %v520
        %v723 = vpop.f32.mrf.mxu0
        %v724 = vadd.f32 %v675, %v723
        %v725 = vpop.f32.mrf.mxu0
        %v726 = vadd.f32 %v677, %v725
        %727 = vmatmul.bf16.gmra.mxu0 %v522
        %v728 = vpop.f32.mrf.mxu0
        %v729 = vadd.f32 %v680, %v728
        %v730 = vpop.f32.mrf.mxu0
        %v731 = vadd.f32 %v682, %v730
        %732 = vdwg.mxu0
        %v733 = vadd.f32 %v427, %v694
        %v734 = vadd.f32 %v428, %v696
        %v735 = vadd.f32 %v429, %v699
        %v736 = vadd.f32 %v430, %v701
        %v737 = vadd.f32 %v431, %v704
        %v738 = vadd.f32 %v432, %v706
        %v739 = vadd.f32 %v433, %v709
        %v740 = vadd.f32 %v434, %v711
        %v741 = vadd.f32 %v435, %v714
        %v742 = vadd.f32 %v436, %v716
        %v743 = vadd.f32 %v437, %v719
        %v744 = vadd.f32 %v438, %v721
        %v745 = vadd.f32 %v439, %v724
        %v746 = vadd.f32 %v440, %v726
        %v747 = vadd.f32 %v441, %v729
        %v748 = vadd.f32 %v442, %v731
        %749 = vst [vmem:[#allocation2] sm:$0xff] %v733
        %750 = vst [vmem:[#allocation2 + $0x8] sm:$0xff] %v734
        %751 = vst [vmem:[#allocation2 + $0x10] sm:$0xff] %v735
        %752 = vst [vmem:[#allocation2 + $0x18] sm:$0xff] %v736
        %753 = vst [vmem:[#allocation2 + $0x20] sm:$0xff] %v737
        %754 = vst [vmem:[#allocation2 + $0x28] sm:$0xff] %v738
        %755 = vst [vmem:[#allocation2 + $0x30] sm:$0xff] %v739
        %756 = vst [vmem:[#allocation2 + $0x38] sm:$0xff] %v740
        %757 = vst [vmem:[#allocation2 + $0x40] sm:$0xff] %v741
        %758 = vst [vmem:[#allocation2 + $0x48] sm:$0xff] %v742
        %759 = vst [vmem:[#allocation2 + $0x50] sm:$0xff] %v743
        %760 = vst [vmem:[#allocation2 + $0x58] sm:$0xff] %v744
        %761 = vst [vmem:[#allocation2 + $0x60] sm:$0xff] %v745
        %762 = vst [vmem:[#allocation2 + $0x68] sm:$0xff] %v746
        %763 = vst [vmem:[#allocation2 + $0x70] sm:$0xff] %v747
        %764 = vst [vmem:[#allocation2 + $0x78] sm:$0xff] %v748
        // Predicated region
        $region69: #{tpu_custom_call.1} parent=47 // pred_check
          %p765 = pneg %p370
        $region70: #{tpu_custom_call.1} parent=47 // pred_check_branch
          %767 = sbr.rel (%p765) target = $region72
        $region71: #{tpu_custom_call.1} parent=47 // pred_region
          %v768 = vld [vmem:[#allocation2] sm:$0xff]
          %v769 = vld [vmem:[#allocation2 + $0x8] sm:$0xff]
          %v770 = vld [vmem:[#allocation2 + $0x10] sm:$0xff]
          %v771 = vld [vmem:[#allocation2 + $0x18] sm:$0xff]
          %v772 = vld [vmem:[#allocation2 + $0x20] sm:$0xff]
          %v773 = vld [vmem:[#allocation2 + $0x28] sm:$0xff]
          %v774 = vld [vmem:[#allocation2 + $0x30] sm:$0xff]
          %v775 = vld [vmem:[#allocation2 + $0x38] sm:$0xff]
          %v776 = vld [vmem:[#allocation2 + $0x40] sm:$0xff]
          %v777 = vld [vmem:[#allocation2 + $0x48] sm:$0xff]
          %v778 = vld [vmem:[#allocation2 + $0x50] sm:$0xff]
          %v779 = vld [vmem:[#allocation2 + $0x58] sm:$0xff]
          %v780 = vld [vmem:[#allocation2 + $0x60] sm:$0xff]
          %v781 = vld [vmem:[#allocation2 + $0x68] sm:$0xff]
          %v782 = vld [vmem:[#allocation2 + $0x70] sm:$0xff]
          %v783 = vld [vmem:[#allocation2 + $0x78] sm:$0xff]
          %v784 = vld [vmem:[#allocation9] sm:$0xff]
          %v785 = vld [vmem:[#allocation9 + $0x8] sm:$0xff]
          %v786 = vld [vmem:[#allocation9 + $0x10] sm:$0xff]
          %v787 = vld [vmem:[#allocation9 + $0x18] sm:$0xff]
          %v788 = vld [vmem:[#allocation9 + $0x20] sm:$0xff]
          %v789 = vld [vmem:[#allocation9 + $0x28] sm:$0xff]
          %v790 = vld [vmem:[#allocation9 + $0x30] sm:$0xff]
          %v791 = vld [vmem:[#allocation9 + $0x38] sm:$0xff]
          %v792 = vld [vmem:[#allocation9 + $0x40] sm:$0xff]
          %v793 = vld [vmem:[#allocation9 + $0x48] sm:$0xff]
          %v794 = vld [vmem:[#allocation9 + $0x50] sm:$0xff]
          %v795 = vld [vmem:[#allocation9 + $0x58] sm:$0xff]
          %v796 = vld [vmem:[#allocation9 + $0x60] sm:$0xff]
          %v797 = vld [vmem:[#allocation9 + $0x68] sm:$0xff]
          %v798 = vld [vmem:[#allocation9 + $0x70] sm:$0xff]
          %v799 = vld [vmem:[#allocation9 + $0x78] sm:$0xff]
          %v800 = vld [vmem:[%s3] sm:$0x1]
          %v802 = vperm.slane %v800, 0
          %804 = vmatpush.msra.mxu0 %v799
          %805 = vmatpush.msra.mxu0 %v798
          %806 = vmatpush.msra.mxu0 %v797
          %807 = vmatpush.msra.mxu0 %v796
          %808 = vmatpush.msra.mxu0 %v795
          %809 = vmatpush.msra.mxu0 %v794
          %810 = vmatpush.msra.mxu0 %v793
          %811 = vmatpush.msra.mxu0 %v792
          %812 = vmatpush.msra.mxu0 %v791
          %813 = vmatpush.msra.mxu0 %v790
          %814 = vmatpush.msra.mxu0 %v789
          %815 = vmatpush.msra.mxu0 %v788
          %816 = vmatpush.msra.mxu0 %v787
          %817 = vmatpush.msra.mxu0 %v786
          %818 = vmatpush.msra.mxu0 %v785
          %819 = vmatpush.msra.mxu0 %v784
          %820 = vmatmul.f32.gmra.mxu0 %v768
          %v821 = vpop.f32.mrf.mxu0
          %v822 = vadd.f32 %v802, %v821
          %823 = vmatmul.f32.gmra.mxu0 %v769
          %v824 = vpop.f32.mrf.mxu0
          %v825 = vadd.f32 %v802, %v824
          %826 = vmatmul.f32.gmra.mxu0 %v770
          %v827 = vpop.f32.mrf.mxu0
          %v828 = vadd.f32 %v802, %v827
          %829 = vmatmul.f32.gmra.mxu0 %v771
          %v830 = vpop.f32.mrf.mxu0
          %v831 = vadd.f32 %v802, %v830
          %832 = vmatmul.f32.gmra.mxu0 %v772
          %v833 = vpop.f32.mrf.mxu0
          %v834 = vadd.f32 %v802, %v833
          %835 = vmatmul.f32.gmra.mxu0 %v773
          %v836 = vpop.f32.mrf.mxu0
          %v837 = vadd.f32 %v802, %v836
          %838 = vmatmul.f32.gmra.mxu0 %v774
          %v839 = vpop.f32.mrf.mxu0
          %v840 = vadd.f32 %v802, %v839
          %841 = vmatmul.f32.gmra.mxu0 %v775
          %v842 = vpop.f32.mrf.mxu0
          %v843 = vadd.f32 %v802, %v842
          %844 = vmatmul.f32.gmra.mxu0 %v776
          %v845 = vpop.f32.mrf.mxu0
          %v846 = vadd.f32 %v802, %v845
          %847 = vmatmul.f32.gmra.mxu0 %v777
          %v848 = vpop.f32.mrf.mxu0
          %v849 = vadd.f32 %v802, %v848
          %850 = vmatmul.f32.gmra.mxu0 %v778
          %v851 = vpop.f32.mrf.mxu0
          %v852 = vadd.f32 %v802, %v851
          %853 = vmatmul.f32.gmra.mxu0 %v779
          %v854 = vpop.f32.mrf.mxu0
          %v855 = vadd.f32 %v802, %v854
          %856 = vmatmul.f32.gmra.mxu0 %v780
          %v857 = vpop.f32.mrf.mxu0
          %v858 = vadd.f32 %v802, %v857
          %859 = vmatmul.f32.gmra.mxu0 %v781
          %v860 = vpop.f32.mrf.mxu0
          %v861 = vadd.f32 %v802, %v860
          %862 = vmatmul.f32.gmra.mxu0 %v782
          %v863 = vpop.f32.mrf.mxu0
          %v864 = vadd.f32 %v802, %v863
          %865 = vmatmul.f32.gmra.mxu0 %v783
          %v866 = vpop.f32.mrf.mxu0
          %v867 = vadd.f32 %v802, %v866
          %868 = vdwg.mxu0
          %v869 = vmax.f32 %v822, 0.0
          %v870 = vmax.f32 %v825, 0.0
          %v871 = vmax.f32 %v828, 0.0
          %v872 = vmax.f32 %v831, 0.0
          %v873 = vmax.f32 %v834, 0.0
          %v874 = vmax.f32 %v837, 0.0
          %v875 = vmax.f32 %v840, 0.0
          %v876 = vmax.f32 %v843, 0.0
          %v877 = vmax.f32 %v846, 0.0
          %v878 = vmax.f32 %v849, 0.0
          %v879 = vmax.f32 %v852, 0.0
          %v880 = vmax.f32 %v855, 0.0
          %v881 = vmax.f32 %v858, 0.0
          %v882 = vmax.f32 %v861, 0.0
          %v883 = vmax.f32 %v864, 0.0
          %v884 = vmax.f32 %v867, 0.0
          %v885 = vld [vmem:[#allocation10] sm:$0xff]
          %v886 = vld [vmem:[#allocation10 + $0x8] sm:$0xff]
          %v887 = vld [vmem:[#allocation10 + $0x10] sm:$0xff]
          %v888 = vld [vmem:[#allocation10 + $0x18] sm:$0xff]
          %v889 = vld [vmem:[#allocation10 + $0x20] sm:$0xff]
          %v890 = vld [vmem:[#allocation10 + $0x28] sm:$0xff]
          %v891 = vld [vmem:[#allocation10 + $0x30] sm:$0xff]
          %v892 = vld [vmem:[#allocation10 + $0x38] sm:$0xff]
          %v893 = vld [vmem:[#allocation10 + $0x40] sm:$0xff]
          %v894 = vld [vmem:[#allocation10 + $0x48] sm:$0xff]
          %v895 = vld [vmem:[#allocation10 + $0x50] sm:$0xff]
          %v896 = vld [vmem:[#allocation10 + $0x58] sm:$0xff]
          %v897 = vld [vmem:[#allocation10 + $0x60] sm:$0xff]
          %v898 = vld [vmem:[#allocation10 + $0x68] sm:$0xff]
          %v899 = vld [vmem:[#allocation10 + $0x70] sm:$0xff]
          %v900 = vld [vmem:[#allocation10 + $0x78] sm:$0xff]
          %v901 = vld [vmem:[%s5] sm:$0x1]
          %v903 = vperm.slane %v901, 0
          %905 = vmatpush.msra.mxu0 %v900
          %906 = vmatpush.msra.mxu0 %v899
          %907 = vmatpush.msra.mxu0 %v898
          %908 = vmatpush.msra.mxu0 %v897
          %909 = vmatpush.msra.mxu0 %v896
          %910 = vmatpush.msra.mxu0 %v895
          %911 = vmatpush.msra.mxu0 %v894
          %912 = vmatpush.msra.mxu0 %v893
          %913 = vmatpush.msra.mxu0 %v892
          %914 = vmatpush.msra.mxu0 %v891
          %915 = vmatpush.msra.mxu0 %v890
          %916 = vmatpush.msra.mxu0 %v889
          %917 = vmatpush.msra.mxu0 %v888
          %918 = vmatpush.msra.mxu0 %v887
          %919 = vmatpush.msra.mxu0 %v886
          %920 = vmatpush.msra.mxu0 %v885
          %921 = vmatmul.f32.gmra.mxu0 %v869
          %v922 = vpop.f32.mrf.mxu0
          %v923 = vadd.f32 %v903, %v922
          %924 = vmatmul.f32.gmra.mxu0 %v870
          %v925 = vpop.f32.mrf.mxu0
          %v926 = vadd.f32 %v903, %v925
          %927 = vmatmul.f32.gmra.mxu0 %v871
          %v928 = vpop.f32.mrf.mxu0
          %v929 = vadd.f32 %v903, %v928
          %930 = vmatmul.f32.gmra.mxu0 %v872
          %v931 = vpop.f32.mrf.mxu0
          %v932 = vadd.f32 %v903, %v931
          %933 = vmatmul.f32.gmra.mxu0 %v873
          %v934 = vpop.f32.mrf.mxu0
          %v935 = vadd.f32 %v903, %v934
          %936 = vmatmul.f32.gmra.mxu0 %v874
          %v937 = vpop.f32.mrf.mxu0
          %v938 = vadd.f32 %v903, %v937
          %939 = vmatmul.f32.gmra.mxu0 %v875
          %v940 = vpop.f32.mrf.mxu0
          %v941 = vadd.f32 %v903, %v940
          %942 = vmatmul.f32.gmra.mxu0 %v876
          %v943 = vpop.f32.mrf.mxu0
          %v944 = vadd.f32 %v903, %v943
          %945 = vmatmul.f32.gmra.mxu0 %v877
          %v946 = vpop.f32.mrf.mxu0
          %v947 = vadd.f32 %v903, %v946
          %948 = vmatmul.f32.gmra.mxu0 %v878
          %v949 = vpop.f32.mrf.mxu0
          %v950 = vadd.f32 %v903, %v949
          %951 = vmatmul.f32.gmra.mxu0 %v879
          %v952 = vpop.f32.mrf.mxu0
          %v953 = vadd.f32 %v903, %v952
          %954 = vmatmul.f32.gmra.mxu0 %v880
          %v955 = vpop.f32.mrf.mxu0
          %v956 = vadd.f32 %v903, %v955
          %957 = vmatmul.f32.gmra.mxu0 %v881
          %v958 = vpop.f32.mrf.mxu0
          %v959 = vadd.f32 %v903, %v958
          %960 = vmatmul.f32.gmra.mxu0 %v882
          %v961 = vpop.f32.mrf.mxu0
          %v962 = vadd.f32 %v903, %v961
          %963 = vmatmul.f32.gmra.mxu0 %v883
          %v964 = vpop.f32.mrf.mxu0
          %v965 = vadd.f32 %v903, %v964
          %966 = vmatmul.f32.gmra.mxu0 %v884
          %v967 = vpop.f32.mrf.mxu0
          %v968 = vadd.f32 %v903, %v967
          %969 = vdwg.mxu0
          %s970 = sld [smem:[#allocation3]]
          %vm971 = vcmp.gt.f32.partialorder %v923, 0.0
          %vm972 = vcmp.gt.f32.partialorder %v926, 0.0
          %vm973 = vcmp.gt.f32.partialorder %v929, 0.0
          %vm974 = vcmp.gt.f32.partialorder %v932, 0.0
          %vm975 = vcmp.gt.f32.partialorder %v935, 0.0
          %vm976 = vcmp.gt.f32.partialorder %v938, 0.0
          %vm977 = vcmp.gt.f32.partialorder %v941, 0.0
          %vm978 = vcmp.gt.f32.partialorder %v944, 0.0
          %vm979 = vcmp.gt.f32.partialorder %v947, 0.0
          %vm980 = vcmp.gt.f32.partialorder %v950, 0.0
          %vm981 = vcmp.gt.f32.partialorder %v953, 0.0
          %vm982 = vcmp.gt.f32.partialorder %v956, 0.0
          %vm983 = vcmp.gt.f32.partialorder %v959, 0.0
          %vm984 = vcmp.gt.f32.partialorder %v962, 0.0
          %vm985 = vcmp.gt.f32.partialorder %v965, 0.0
          %vm986 = vcmp.gt.f32.partialorder %v968, 0.0
          %v987 = vstv %s970
          %v988 = vmul.f32 %v987, %v923
          %v989 = vmul.f32 %v987, %v926
          %v990 = vmul.f32 %v987, %v929
          %v991 = vmul.f32 %v987, %v932
          %v992 = vmul.f32 %v987, %v935
          %v993 = vmul.f32 %v987, %v938
          %v994 = vmul.f32 %v987, %v941
          %v995 = vmul.f32 %v987, %v944
          %v996 = vmul.f32 %v987, %v947
          %v997 = vmul.f32 %v987, %v950
          %v998 = vmul.f32 %v987, %v953
          %v999 = vmul.f32 %v987, %v956
          %v1000 = vmul.f32 %v987, %v959
          %v1001 = vmul.f32 %v987, %v962
          %v1002 = vmul.f32 %v987, %v965
          %v1003 = vmul.f32 %v987, %v968
          %v1004 = vsel %vm971, %v923, %v988
          %v1005 = vsel %vm972, %v926, %v989
          %v1006 = vsel %vm973, %v929, %v990
          %v1007 = vsel %vm974, %v932, %v991
          %v1008 = vsel %vm975, %v935, %v992
          %v1009 = vsel %vm976, %v938, %v993
          %v1010 = vsel %vm977, %v941, %v994
          %v1011 = vsel %vm978, %v944, %v995
          %v1012 = vsel %vm979, %v947, %v996
          %v1013 = vsel %vm980, %v950, %v997
          %v1014 = vsel %vm981, %v953, %v998
          %v1015 = vsel %vm982, %v956, %v999
          %v1016 = vsel %vm983, %v959, %v1000
          %v1017 = vsel %vm984, %v962, %v1001
          %v1018 = vsel %vm985, %v965, %v1002
          %v1019 = vsel %vm986, %v968, %v1003
          %v1020 = vpack.c.bf16 %v1004, %v1004
          %v1021 = vpack.c.bf16 %v1005, %v1005
          %v1022 = vpack.c.bf16 %v1006, %v1006
          %v1023 = vpack.c.bf16 %v1007, %v1007
          %v1024 = vpack.c.bf16 %v1008, %v1008
          %v1025 = vpack.c.bf16 %v1009, %v1009
          %v1026 = vpack.c.bf16 %v1010, %v1010
          %v1027 = vpack.c.bf16 %v1011, %v1011
          %v1028 = vpack.c.bf16 %v1012, %v1012
          %v1029 = vpack.c.bf16 %v1013, %v1013
          %v1030 = vpack.c.bf16 %v1014, %v1014
          %v1031 = vpack.c.bf16 %v1015, %v1015
          %v1032 = vpack.c.bf16 %v1016, %v1016
          %v1033 = vpack.c.bf16 %v1017, %v1017
          %v1034 = vpack.c.bf16 %v1018, %v1018
          %v1035 = vpack.c.bf16 %v1019, %v1019
          %1036 = vst [vmem:[%s366] sm:$0xf] %v1020
          %1037 = vst [vmem:[%s366 + $0x4] sm:$0xf] %v1021
          %1038 = vst [vmem:[%s366 + $0x8] sm:$0xf] %v1022
          %1039 = vst [vmem:[%s366 + $0xc] sm:$0xf] %v1023
          %1040 = vst [vmem:[%s366 + $0x10] sm:$0xf] %v1024
          %1041 = vst [vmem:[%s366 + $0x14] sm:$0xf] %v1025
          %1042 = vst [vmem:[%s366 + $0x18] sm:$0xf] %v1026
          %1043 = vst [vmem:[%s366 + $0x1c] sm:$0xf] %v1027
          %1044 = vst [vmem:[%s366 + $0x20] sm:$0xf] %v1028
          %1045 = vst [vmem:[%s366 + $0x24] sm:$0xf] %v1029
          %1046 = vst [vmem:[%s366 + $0x28] sm:$0xf] %v1030
          %1047 = vst [vmem:[%s366 + $0x2c] sm:$0xf] %v1031
          %1048 = vst [vmem:[%s366 + $0x30] sm:$0xf] %v1032
          %1049 = vst [vmem:[%s366 + $0x34] sm:$0xf] %v1033
          %1050 = vst [vmem:[%s366 + $0x38] sm:$0xf] %v1034
          %1051 = vst [vmem:[%s366 + $0x3c] sm:$0xf] %v1035
        $region72: #{tpu_custom_call.1} parent=47 // pred_fallthru
          _
        %s1052 = sand.u32 %s201, 1
        %s1053 = scalar_lea.sflag [#allocation6], %s1052
        %s1054 = sand.u32 %s201, 1
        %s1055 = smul.addr %s1054, 64
        %s1056 = scalar_lea.vmem [#allocation12], %s1055
        // Predicated region
        $region73: #{tpu_custom_call.1} parent=47 // pred_check
          %p1057 = pneg %p211
        $region74: #{tpu_custom_call.1} parent=47 // pred_check_branch
          %1059 = sbr.rel (%p1057) target = $region76
        $region75: #{tpu_custom_call.1} parent=47 // pred_region
          %s1060 = smul.u32 16, %s31
          %1062 = vsyncadd %s1053, 0
          %s1063 = smul.addr %s1060, 4
          %s1064 = scalar_lea.hbm %s7, %s1063
          %s1065 = sshll.u32 %s1056, 4
          %s1066 = int_to_ptr.vmem [resolvable:$true] %s1065
          %s1067 = sshll.u32 %s1064, 4
          %s1068 = int_to_ptr.hbm [resolvable:$true] %s1067
          %1073 = dma.vmem_to_hbm [thread:$0]  %s1066, 1024, %s1068, %s1053, 64, 64, 4
        $region76: #{tpu_custom_call.1} parent=47 // pred_fallthru
          _
      $region48: #{tpu_custom_call.1} parent=5 // pred_fallthru
        _
      %p1074 = scmp.le.s32.totalorder 2, %s22
      // Predicated region
      $region77: #{tpu_custom_call.1} parent=5 // pred_check
        %p1075 = pneg %p1074
      $region78: #{tpu_custom_call.1} parent=5 // pred_check_branch
        %1077 = sbr.rel (%p1075) target = $region80
      $region79: #{tpu_custom_call.1} parent=5 // pred_region
        %s1078 = ssub.s32 %s22, 2
        // Predicated region
        $region81: #{tpu_custom_call.1} parent=79 // pred_check
          %p1079 = pneg %p217
        $region82: #{tpu_custom_call.1} parent=79 // pred_check_branch
          %1081 = sbr.rel (%p1079) target = $region84
        $region83: #{tpu_custom_call.1} parent=79 // pred_region
          %s1082 = sand.u32 %s202, 1
          %s1083 = scalar_lea.sflag [#allocation6], %s1082
          %s1084 = sand.u32 %s202, 1
          %s1085 = smul.addr %s1084, 64
          %s1086 = scalar_lea.vmem [#allocation12], %s1085
          %1088 = dma.done %s1083, 1024
        $region84: #{tpu_custom_call.1} parent=79 // pred_fallthru
          _
      $region80: #{tpu_custom_call.1} parent=5 // pred_fallthru
        _
    $region6: #{tpu_custom_call.1} parent=1 // loop_footer
      %s26 = sadd.s32 1, %s22
    $region7: #{tpu_custom_call.1} parent=1 // loop_footer_branch
      %21 = sbr.rel target = $region3
    $region8: #{tpu_custom_call.1} parent=1 // loop_exit
      _
    %1089 = vsyncpa [#allocation5], 1
    %s1090 = scalar_lea.sflag [#allocation5], 1
    %1091 = vsyncpa %s1090, 1
    %1092 = vsyncpa [#allocation8], 1
    %1093 = vsyncpa [#allocation11], 1
    %1094 = vsyncpa [#allocation6], 1
    %s1095 = scalar_lea.sflag [#allocation6], 1
    %1096 = vsyncpa %s1095, 1

</llo_original>
